<compile_context>
chip_gen: v5e
topology: v5e:2x2
jax: 0.10.0
libtpu: 0.0.40
codegen_flags: <defaults>
</compile_context>

<pallas_src>
import functools

import jax
import jax.numpy as jnp
from jax.experimental import pallas as pl
from jax.experimental.pallas import tpu as pltpu


def _round_up(x, m):
    return (x + m - 1) // m * m


def tanh_attention_kernel(q_ref, m_ref, wq_ref, bq_ref, wv_ref, bv_ref, o_ref,
                          *, mxu_dtype):
    # q_ref / m_ref: (TM, F) row tile; wq_ref: (F, F); bq/wv: (1, F); bv: SMEM (1,)
    q = q_ref[...]
    wq = wq_ref[...]
    if mxu_dtype is not None:                      # v6e/v7x: bf16-native MXU
        q = q.astype(mxu_dtype)
        wq = wq.astype(mxu_dtype)

    # Query projection on the MXU with f32 accumulation.
    q_proj = jnp.dot(q, wq, preferred_element_type=jnp.float32)
    q_proj = q_proj + bq_ref[...].astype(jnp.float32)             # (TM, F)

    # tanh(q_proj + memory)  (EUP transcendental, f32 on all generations).
    h = jnp.tanh(q_proj + m_ref[...].astype(jnp.float32))         # (TM, F)

    # (F -> 1) projection: VPU multiply + XLU lane reduction, not a 1-col matmul.
    s = jnp.sum(h * wv_ref[...].astype(jnp.float32), axis=-1)     # (TM,)
    s = s + bv_ref[0]

    # Lane-dense store: one (1, TM) slab per grid step.
    o_ref[...] = s[None, :].astype(o_ref.dtype)


def prepare_params(wq, bq, wv, bv):
    """One-time weight preprocessing (hoisted out of the per-call path).

    PyTorch Linear shapes: wq [F, F] (out, in), bq [F], wv [1, F], bv [1].
    """
    wq_t = jnp.asarray(wq).T                       # (F_in, F_out): x @ wq_t == x @ Wq.T
    bq2 = jnp.asarray(bq).reshape(1, -1)
    wv2 = jnp.asarray(wv).reshape(1, -1)
    bv1 = jnp.asarray(bv).reshape(1).astype(jnp.float32)
    return wq_t, bq2, wv2, bv1


def _workset_bytes(tm, f, in_itemsize, out_itemsize, wq_buffers):
    """VMEM working set for one grid step (bytes)."""
    io = 2 * 2 * tm * f * in_itemsize              # q & m tiles, double-buffered
    out = 2 * tm * out_itemsize                    # (1, TM) output, double-buffered
    wts = wq_buffers * f * f * in_itemsize + 2 * 2 * f * in_itemsize
    interm = 3 * tm * f * 4                        # q_proj, h, h*wv (f32 scratch)
    return io + out + wts + interm


_VMEM_BUDGET = 36 * 1024 * 1024        # conservative: fits v7x's 64 MiB/TC physical
_VMEM_LIMIT = 48 * 1024 * 1024         # explicit scoped-VMEM limit (ok on v5e/v6e/v7x)


def tanh_attention(query, memory, params, *, tm_rows=8192, mxu_dtype=None):
    """query, memory: [B, T, F] (same dtype); params from prepare_params()."""
    wq_t, bq2, wv2, bv1 = params
    B, T, F = query.shape
    N = B * T
    itemsize = jnp.dtype(query.dtype).itemsize
    out_itemsize = itemsize

    # Single-buffer the resident Wq only when it is large enough to matter.
    wq_buffers = 1 if F * F * itemsize >= (2 << 20) else 2

    # Row tile: large (>= ~1 MiB per input DMA), multiple of 128 when tiled,
    # shrunk until the full working set fits the per-core VMEM budget.
    TM = max(256, tm_rows - tm_rows % 128)
    while TM > 256 and _workset_bytes(TM, F, itemsize, out_itemsize, wq_buffers) > _VMEM_BUDGET:
        TM = max(256, (TM // 2) // 128 * 128)

    if N <= TM:
        # Single grid step: block == full array, no 128-multiple requirement.
        TM = _round_up(max(N, 1), 8)
        Np = TM
    else:
        Np = _round_up(N, TM)
    grid_len = Np // TM

    # No feature padding; pad rows only if the tile does not divide N.
    q2 = query.reshape(N, F)
    m2 = memory.reshape(N, F)
    if Np != N:
        q2 = jnp.pad(q2, ((0, Np - N), (0, 0)))
        m2 = jnp.pad(m2, ((0, Np - N), (0, 0)))

    if wq_buffers == 1:
        wq_spec = pl.BlockSpec((F, F), lambda i: (0, 0), pipeline_mode=pl.Buffered(1))
    else:
        wq_spec = pl.BlockSpec((F, F), lambda i: (0, 0))

    grid_spec = pltpu.PrefetchScalarGridSpec(
        num_scalar_prefetch=0,
        grid=(grid_len,),
        in_specs=[
            pl.BlockSpec((TM, F), lambda i: (i, 0)),             # query rows
            pl.BlockSpec((TM, F), lambda i: (i, 0)),             # memory rows
            wq_spec,                                             # Wq^T (resident)
            pl.BlockSpec((1, F), lambda i: (0, 0)),              # bq   (resident)
            pl.BlockSpec((1, F), lambda i: (0, 0)),              # Wv row (resident)
            pl.BlockSpec(memory_space=pltpu.MemorySpace.SMEM),   # bv scalar
        ],
        out_specs=pl.BlockSpec((1, TM), lambda i: (0, i)),       # lane-dense out
    )

    cost = pl.CostEstimate(
        flops=2 * N * F * F + 4 * N * F,
        transcendentals=N * F,
        bytes_accessed=2 * N * F * itemsize + N * out_itemsize
        + (F * F + 2 * F) * itemsize + 4,
    )

    kernel = functools.partial(tanh_attention_kernel, mxu_dtype=mxu_dtype)

    out_row = pl.pallas_call(
        kernel,
        out_shape=jax.ShapeDtypeStruct((1, Np), query.dtype),
        grid_spec=grid_spec,
        compiler_params=pltpu.CompilerParams(
            dimension_semantics=("parallel",),
            vmem_limit_bytes=_VMEM_LIMIT,
        ),
        cost_estimate=cost,
    )(q2, m2, wq_t, bq2, wv2, bv1)

    return out_row.reshape(Np)[:N].reshape(B, T, 1)


def tanh_attention_ref(query, memory, wq, bq, wv, bv):
    q_proj = jnp.einsum("btf,gf->btg", query, wq) + bq
    h = jnp.tanh(q_proj + memory)
    return jnp.einsum("btf,gf->btg", h, wv) + bv


if __name__ == "__main__":
    key = jax.random.PRNGKey(0)
    kq, km, k1, k2, k3, k4 = jax.random.split(key, 6)

    B, T, F = 2, 8, 32
    query = jax.random.normal(kq, (B, T, F), dtype=jnp.float32)
    memory = jax.random.normal(km, (B, T, F), dtype=jnp.float32)

    # PyTorch Linear parameter shapes: weight (out, in), bias (out,)
    wq = jax.random.normal(k1, (F, F), dtype=jnp.float32) * 0.1
    bq = jax.random.normal(k2, (F,), dtype=jnp.float32) * 0.1
    wv = jax.random.normal(k3, (1, F), dtype=jnp.float32) * 0.1
    bv = jax.random.normal(k4, (1,), dtype=jnp.float32) * 0.1

    params = prepare_params(wq, bq, wv, bv)          # one-time weight prep (hoisted)

    out = tanh_attention(query, memory, params)
    out = jax.block_until_ready(out)
    ref = tanh_attention_ref(query, memory, wq, bq, wv, bv)
    assert out.shape == (B, T, 1), out.shape
    assert jnp.allclose(out, ref, atol=1e-5, rtol=1e-5), "mismatch vs reference"

    # Also exercise the multi-step (tiled + row-padded) path.
    B2, T2 = 4, 80                                   # N = 320 rows -> grid of 2, TM=256
    q_big = jax.random.normal(kq, (B2, T2, F), dtype=jnp.float32)
    m_big = jax.random.normal(km, (B2, T2, F), dtype=jnp.float32)
    out2 = jax.block_until_ready(tanh_attention(q_big, m_big, params, tm_rows=256))
    ref2 = tanh_attention_ref(q_big, m_big, wq, bq, wv, bv)
    assert out2.shape == (B2, T2, 1), out2.shape
    assert jnp.allclose(out2, ref2, atol=1e-5, rtol=1e-5), "mismatch vs reference (tiled)"

    print("KERNEL_OK")
</pallas_src>

<mosaic_0001>
module attributes {stable_mosaic.version = 11 : i64} {
  func.func @tanh_attention_kernel(%arg0: i32, %arg1: memref<16x32xf32, #tpu.memory_space<vmem>>, %arg2: memref<16x32xf32, #tpu.memory_space<vmem>>, %arg3: memref<32x32xf32, #tpu.memory_space<vmem>>, %arg4: memref<1x32xf32, #tpu.memory_space<vmem>>, %arg5: memref<1x32xf32, #tpu.memory_space<vmem>>, %arg6: memref<1xf32, #tpu.memory_space<smem>>, %arg7: memref<1x16xf32, #tpu.memory_space<vmem>>) attributes {dimension_semantics = [#tpu.dimension_semantics<parallel>], iteration_bounds = array<i64: 1>, scalar_prefetch = 0 : i64, scratch_operands = 0 : i64, tpu.core_type = #tpu.core_type<tc>, window_params = [{transform_indices = @transform_0, window_bounds = array<i64: 16, 32>}, {transform_indices = @transform_1, window_bounds = array<i64: 16, 32>}, {pipeline_mode = #tpu.pipeline_mode<synchronous>, transform_indices = @transform_2, window_bounds = array<i64: 32, 32>}, {pipeline_mode = #tpu.pipeline_mode<synchronous>, transform_indices = @transform_3, window_bounds = array<i64: 1, 32>}, {pipeline_mode = #tpu.pipeline_mode<synchronous>, transform_indices = @transform_4, window_bounds = array<i64: 1, 32>}, {transform_indices = @transform_5, window_bounds = array<i64: 1>}, {transform_indices = @transform_6, window_bounds = array<i64: 1, 16>}]} {
    %c0 = arith.constant 0 : index
    %c0_0 = arith.constant 0 : index
    %0 = vector.load %arg1[%c0, %c0_0] : memref<16x32xf32, #tpu.memory_space<vmem>>, vector<16x32xf32>
    %c0_1 = arith.constant 0 : index
    %c0_2 = arith.constant 0 : index
    %1 = vector.load %arg3[%c0_1, %c0_2] : memref<32x32xf32, #tpu.memory_space<vmem>>, vector<32x32xf32>
    %cst = arith.constant dense<0.000000e+00> : vector<16x32xf32>
    %2 = tpu.matmul %0, %1, %cst {dimension_numbers = #tpu.dot_dimension_numbers<[1], [0], [0], [1], [0, 0, 1, 1], [], []>} : vector<16x32xf32>, vector<32x32xf32>, vector<16x32xf32> -> vector<16x32xf32>
    %c0_3 = arith.constant 0 : index
    %c0_4 = arith.constant 0 : index
    %3 = vector.load %arg4[%c0_3, %c0_4] : memref<1x32xf32, #tpu.memory_space<vmem>>, vector<1x32xf32>
    %4 = vector.broadcast %3 : vector<1x32xf32> to vector<16x32xf32>
    %5 = arith.addf %2, %4 : vector<16x32xf32>
    %c0_5 = arith.constant 0 : index
    %c0_6 = arith.constant 0 : index
    %6 = vector.load %arg2[%c0_5, %c0_6] : memref<16x32xf32, #tpu.memory_space<vmem>>, vector<16x32xf32>
    %7 = arith.addf %5, %6 : vector<16x32xf32>
    %8 = math.tanh %7 : vector<16x32xf32>
    %c0_7 = arith.constant 0 : index
    %c0_8 = arith.constant 0 : index
    %9 = vector.load %arg5[%c0_7, %c0_8] : memref<1x32xf32, #tpu.memory_space<vmem>>, vector<1x32xf32>
    %10 = vector.broadcast %9 : vector<1x32xf32> to vector<16x32xf32>
    %11 = arith.mulf %8, %10 : vector<16x32xf32>
    %cst_9 = arith.constant dense<0.000000e+00> : vector<16xf32>
    %12 = vector.multi_reduction <add>, %11, %cst_9 [1] : vector<16x32xf32> to vector<16xf32>
    %c0_10 = arith.constant 0 : index
    %13 = memref.load %arg6[%c0_10] : memref<1xf32, #tpu.memory_space<smem>>
    %14 = vector.broadcast %13 : f32 to vector<16xf32>
    %15 = arith.addf %12, %14 : vector<16xf32>
    %16 = vector.shape_cast %15 : vector<16xf32> to vector<1x16xf32>
    %c0_11 = arith.constant 0 : index
    %c0_12 = arith.constant 0 : index
    %17 = vector.load %arg7[%c0_11, %c0_12] : memref<1x16xf32, #tpu.memory_space<vmem>>, vector<1x16xf32>
    tpu.vector_store %arg7[%c0_11, %c0_12], %16 {strides = array<i32>} : memref<1x16xf32, #tpu.memory_space<vmem>>, vector<1x16xf32>,
    return
  }
  func.func @transform_0(%arg0: i32) -> (i32, i32) {
    %c0_i32 = arith.constant 0 : i32
    %c0_i32_0 = arith.constant 0 : i32
    return %arg0, %c0_i32 : i32, i32
  }
  func.func @transform_1(%arg0: i32) -> (i32, i32) {
    %c0_i32 = arith.constant 0 : i32
    %c0_i32_0 = arith.constant 0 : i32
    return %arg0, %c0_i32 : i32, i32
  }
  func.func @transform_2(%arg0: i32) -> (i32, i32) {
    %c0_i32 = arith.constant 0 : i32
    %c0_i32_0 = arith.constant 0 : i32
    %c0_i32_1 = arith.constant 0 : i32
    return %c0_i32, %c0_i32_0 : i32, i32
  }
  func.func @transform_3(%arg0: i32) -> (i32, i32) {
    %c0_i32 = arith.constant 0 : i32
    %c0_i32_0 = arith.constant 0 : i32
    %c0_i32_1 = arith.constant 0 : i32
    return %c0_i32, %c0_i32_0 : i32, i32
  }
  func.func @transform_4(%arg0: i32) -> (i32, i32) {
    %c0_i32 = arith.constant 0 : i32
    %c0_i32_0 = arith.constant 0 : i32
    %c0_i32_1 = arith.constant 0 : i32
    return %c0_i32, %c0_i32_0 : i32, i32
  }
  func.func @transform_5(%arg0: i32) -> i32 {
    %c0_i32 = arith.constant 0 : i32
    %c0_i32_0 = arith.constant 0 : i32
    return %c0_i32 : i32
  }
  func.func @transform_6(%arg0: i32) -> (i32, i32) {
    %c0_i32 = arith.constant 0 : i32
    %c0_i32_0 = arith.constant 0 : i32
    return %c0_i32, %arg0 : i32, i32
  }
}

</mosaic_0001>

<llo_original>
// kernel: tpu_custom_call.1
$region0: #{tpu_custom_call.1}
  #allocation0 [shape = 'u32[]', space=smem, size = 0x4, offset = 0x4, fixed_abs, tag = 'smem constant byte address 0x4 - core index']
  #allocation1 [shape = 'u32[72,128]{1,0:T(1,128)}', space=vmem, size = 0x9000, scoped, tag = 'internal scratch']
  #allocation2 [shape = 'f32[1]{0:T(128)S(6)}', space=smem, size = 0x200, scoped, tag = 'scoped memory for tpu_custom_call.1']
  %s0 = inlined_call_operand.hbm [shape: f32[16,32], index: 0, kind: input, shape index: {}]
  %s1 = inlined_call_operand.hbm [shape: f32[16,32], index: 1, kind: input, shape index: {}]
  %s2 = inlined_call_operand.hbm [shape: f32[32,32], index: 2, kind: input, shape index: {}]
  %s3 = inlined_call_operand.vmem [shape: f32[1,32], index: 3, kind: input, shape index: {}]
  %s4 = inlined_call_operand.vmem [shape: f32[1,32], index: 4, kind: input, shape index: {}]
  %s5 = inlined_call_operand.<no memory space> [shape: f32[1], index: 5, kind: input, shape index: {}]
  %s6 = inlined_call_operand.hbm [shape: f32[1,16], index: 6, kind: output, shape index: {}]
  %s7 = sld [smem:[#allocation0]]
  $region46: #{tpu_custom_call.1} parent=0
    _
  %s9 = ssub.s32 1, %s7
  %s10 = scalar_select 0, %s9, %s7
  %11 = sst [smem:[#allocation2]] %s5
  $region1: #{tpu_custom_call.1} parent=0
    #allocation3 [shape = 'u8[8192]{0}', space=vmem, size = 0x2000, scoped, tag = 'input window, operand 0, single buffered']
    #allocation4 [shape = 's32[1]{0}', space=sflag, size = 0x4, scoped, tag = 'scoped memory for tpu_custom_call.1']
    #allocation5 [shape = 's32[1]{0}', space=sflag, size = 0x4, scoped, tag = 'scoped memory for tpu_custom_call.1']
    #allocation6 [shape = 'u8[8192]{0}', space=vmem, size = 0x2000, scoped, tag = 'input window, operand 1, single buffered']
    #allocation7 [shape = 's32[1]{0}', space=sflag, size = 0x4, scoped, tag = 'scoped memory for tpu_custom_call.1']
    #allocation8 [shape = 'u8[16384]{0}', space=vmem, size = 0x4000, scoped, tag = 'input window, operand 2, single buffered']
    #allocation9 [shape = 'u8[512]{0}', space=vmem, size = 0x400, scoped, tag = 'output window, operand 0, single buffered']
    %12 = vsyncpa [#allocation4], 0
    %13 = vsyncpa [#allocation7], 0
    %14 = vsyncpa [#allocation5], 0
    // Predicated region
    $region2: #{tpu_custom_call.1} parent=1 // pred_check
      _
    $region3: #{tpu_custom_call.1} parent=1 // pred_check_branch
      %16 = sbr.rel (0) target = $region5
    $region4: #{tpu_custom_call.1} parent=1 // pred_region
      %18 = vsyncadd [#allocation4], 0
      %s19 = sshll.u32 %s0, 4
      %s20 = int_to_ptr.hbm [resolvable:$true] %s19
      %s21 = sshll.u32 [#allocation3], 4
      %s22 = int_to_ptr.vmem [resolvable:$true] %s21
      %27 = dma.hbm_to_vmem [thread:$0]  %s20, 256, %s22, [#allocation4], 128, 128, 8
    $region5: #{tpu_custom_call.1} parent=1 // pred_fallthru
      _
    // Predicated region
    $region6: #{tpu_custom_call.1} parent=1 // pred_check
      _
    $region7: #{tpu_custom_call.1} parent=1 // pred_check_branch
      %29 = sbr.rel (0) target = $region9
    $region8: #{tpu_custom_call.1} parent=1 // pred_region
      %31 = vsyncadd [#allocation7], 0
      %s32 = sshll.u32 %s1, 4
      %s33 = int_to_ptr.hbm [resolvable:$true] %s32
      %s34 = sshll.u32 [#allocation6], 4
      %s35 = int_to_ptr.vmem [resolvable:$true] %s34
      %40 = dma.hbm_to_vmem [thread:$0]  %s33, 256, %s35, [#allocation7], 128, 128, 8
    $region9: #{tpu_custom_call.1} parent=1 // pred_fallthru
      _
    // Predicated region
    $region10: #{tpu_custom_call.1} parent=1 // pred_check
      _
    $region11: #{tpu_custom_call.1} parent=1 // pred_check_branch
      %42 = sbr.rel (0) target = $region13
    $region12: #{tpu_custom_call.1} parent=1 // pred_region
      %44 = vsyncadd [#allocation7], 0
      %s45 = sshll.u32 %s2, 4
      %s46 = int_to_ptr.hbm [resolvable:$true] %s45
      %s47 = sshll.u32 [#allocation8], 4
      %s48 = int_to_ptr.vmem [resolvable:$true] %s47
      %53 = dma.hbm_to_vmem [thread:$0]  %s46, 512, %s48, [#allocation7], 128, 128, 8
    $region13: #{tpu_custom_call.1} parent=1 // pred_fallthru
      _
    // Predicated region
    $region14: #{tpu_custom_call.1} parent=1 // pred_check
      _
    $region15: #{tpu_custom_call.1} parent=1 // pred_check_branch
      %55 = sbr.rel (0) target = $region17
    $region16: #{tpu_custom_call.1} parent=1 // pred_region
      _
    $region17: #{tpu_custom_call.1} parent=1 // pred_fallthru
      _
    // Predicated region
    $region18: #{tpu_custom_call.1} parent=1 // pred_check
      _
    $region19: #{tpu_custom_call.1} parent=1 // pred_check_branch
      %57 = sbr.rel (0) target = $region21
    $region20: #{tpu_custom_call.1} parent=1 // pred_region
      _
    $region21: #{tpu_custom_call.1} parent=1 // pred_fallthru
      _
    // Predicated region
    $region22: #{tpu_custom_call.1} parent=1 // pred_check
      _
    $region23: #{tpu_custom_call.1} parent=1 // pred_check_branch
      %59 = sbr.rel (0) target = $region25
    $region24: #{tpu_custom_call.1} parent=1 // pred_region
      _
    $region25: #{tpu_custom_call.1} parent=1 // pred_fallthru
      _
    // Predicated region
    $region26: #{tpu_custom_call.1} parent=1 // pred_check
      _
    $region27: #{tpu_custom_call.1} parent=1 // pred_check_branch
      %61 = sbr.rel (0) target = $region29
    $region28: #{tpu_custom_call.1} parent=1 // pred_region
      %63 = dma.done [#allocation4], 256
    $region29: #{tpu_custom_call.1} parent=1 // pred_fallthru
      _
    // Predicated region
    $region30: #{tpu_custom_call.1} parent=1 // pred_check
      _
    $region31: #{tpu_custom_call.1} parent=1 // pred_check_branch
      %65 = sbr.rel (0) target = $region33
    $region32: #{tpu_custom_call.1} parent=1 // pred_region
      %67 = dma.done [#allocation7], 256
    $region33: #{tpu_custom_call.1} parent=1 // pred_fallthru
      _
    // Predicated region
    $region34: #{tpu_custom_call.1} parent=1 // pred_check
      _
    $region35: #{tpu_custom_call.1} parent=1 // pred_check_branch
      %69 = sbr.rel (0) target = $region37
    $region36: #{tpu_custom_call.1} parent=1 // pred_region
      %71 = dma.done [#allocation7], 512
    $region37: #{tpu_custom_call.1} parent=1 // pred_fallthru
      _
    %v72 = vld [vmem:[#allocation3] sm:$0xff]
    %v73 = vld [vmem:[#allocation3 + $0x8] sm:$0xff]
    %v74 = vld [vmem:[#allocation8] sm:$0xff]
    %v75 = vld [vmem:[#allocation8 + $0x8] sm:$0xff]
    %v76 = vld [vmem:[#allocation8 + $0x10] sm:$0xff]
    %v77 = vld [vmem:[#allocation8 + $0x18] sm:$0xff]
    %v78 = vld [vmem:[%s3] sm:$0x1]
    %v80 = vperm.slane %v78, 0
    %vm82 = vcmask 261120
    %v84 = vsel %vm82, %v72, 0
    %v87 = vsel %vm82, %v73, 0
    %89 = vmatpush.msra.mxu0 0.0
    %90 = vmatpush.msra.mxu0 0.0
    %91 = vmatpush.msra.mxu0 0.0
    %92 = vmatpush.msra.mxu0 0.0
    %93 = vmatpush.msra.mxu0 0.0
    %94 = vmatpush.msra.mxu0 0.0
    %95 = vmatpush.msra.mxu0 0.0
    %96 = vmatpush.msra.mxu0 0.0
    %97 = vmatpush.msra.mxu0 0.0
    %98 = vmatpush.msra.mxu0 0.0
    %99 = vmatpush.msra.mxu0 0.0
    %100 = vmatpush.msra.mxu0 0.0
    %101 = vmatpush.msra.mxu0 %v77
    %102 = vmatpush.msra.mxu0 %v76
    %103 = vmatpush.msra.mxu0 %v75
    %104 = vmatpush.msra.mxu0 %v74
    %105 = vmatmul.f32.gmra.mxu0 %v84
    %v106 = vpop.f32.mrf.mxu0
    %v107 = vadd.f32 %v80, %v106
    %108 = vmatmul.f32.gmra.mxu0 %v87
    %v109 = vpop.f32.mrf.mxu0
    %v110 = vadd.f32 %v80, %v109
    %111 = vdwg.mxu0
    %v112 = vld [vmem:[#allocation6] sm:$0xff]
    %v113 = vld [vmem:[#allocation6 + $0x8] sm:$0xff]
    %v114 = vadd.f32 %v107, %v112
    %v115 = vadd.f32 %v110, %v113
    %v116 = vtanh.pop %v114
    %v117 = vtanh.pop %v115
    %v118 = vld [vmem:[%s4] sm:$0x1]
    %v120 = vperm.slane %v118, 0
    %v122 = vmul.f32 %v116, %v120
    %v123 = vmul.f32 %v117, %v120
    %v124 = vsel %vm82, %v122, 0.0
    %125 = vadd.xlane.f32.xlu0 %v124
    %v126 = vpop.xlane.xlu0 %125
    %v127 = vsel %vm82, %v123, 0.0
    %128 = vadd.xlane.f32.xlu0 %v127
    %v129 = vpop.xlane.xlu0 %128
    %s130 = sld [smem:[#allocation2]]
    %v131 = vstv %s130
    %v132 = vadd.f32 %v126, %v131
    %v133 = vadd.f32 %v129, %v131
    %v136 = vlaneseq
    %v137 = vand.u32 %v136, 127
    %v138 = vperm.slane %v132, %v137
    %v139 = vadd.s32 %v137, 4294967288
    %v140 = vperm.slane %v133, %v139
    %vm141 = vcmask 130112
    %v142 = vsel %vm141, %v140, %v138
    %vm144 = vcmask 122880
    %145 = vst.msk [vmem:[#allocation9] sm:$0x1] %vm144, %v142
    // Predicated region
    $region38: #{tpu_custom_call.1} parent=1 // pred_check
      _
    $region39: #{tpu_custom_call.1} parent=1 // pred_check_branch
      %147 = sbr.rel (0) target = $region41
    $region40: #{tpu_custom_call.1} parent=1 // pred_region
      %149 = vsyncadd [#allocation5], 0
      %s151 = sshll.u32 [#allocation9], 4
      %s152 = int_to_ptr.vmem [resolvable:$true] %s151
      %s153 = sshll.u32 %s6, 4
      %s154 = int_to_ptr.hbm [resolvable:$true] %s153
      %156 = dma.vmem_to_hbm [thread:$0]  %s152, 16, %s154, [#allocation5]
    $region41: #{tpu_custom_call.1} parent=1 // pred_fallthru
      _
    // Predicated region
    $region42: #{tpu_custom_call.1} parent=1 // pred_check
      _
    $region43: #{tpu_custom_call.1} parent=1 // pred_check_branch
      %158 = sbr.rel (0) target = $region45
    $region44: #{tpu_custom_call.1} parent=1 // pred_region
      %160 = dma.done [#allocation5], 16
    $region45: #{tpu_custom_call.1} parent=1 // pred_fallthru
      _
    %161 = vsyncpa [#allocation4], 1
    %162 = vsyncpa [#allocation7], 1
    %163 = vsyncpa [#allocation5], 1

</llo_original>
